<compile_context>
chip_gen: v6e
topology: v6e:2x2x1
jax: 0.10.0
libtpu: 0.0.40
codegen_flags: <defaults>
</compile_context>

<pallas_src>
import jax
import jax.numpy as jnp
from jax.experimental import pallas as pl
from jax.experimental.pallas import tpu as pltpu

EPS = 1e-5
_VMEM_LIMIT = 32 * 1024 * 1024


def _make_norm_kernel(inv_count, eps, reduce_axis):
    """Two-pass normalization kernel body.

    Grid axes: (stat_block [parallel], pass, r0, r1), where (r0, r1) sweep the reduction
    tiles.  Pass 0 accumulates sum/sumsq elementwise; at the last reduction tile it folds
    them into per-stat scale/shift.  Pass 1 re-reads x tiles and applies y = x*scale+shift.

    reduce_axis: tile axis the stats collapse over
      (1 => stats per sublane-row, 0 => stats per lane-column).
    """

    def kernel(x_ref, w_ref, b_ref, o_ref, acc_s, acc_q, sc_ref, sh_ref):
        p = pl.program_id(1)
        r0 = pl.program_id(2)
        r1 = pl.program_id(3)
        first = jnp.logical_and(r0 == 0, r1 == 0)
        last = jnp.logical_and(r0 == pl.num_programs(2) - 1,
                               r1 == pl.num_programs(3) - 1)

        @pl.when(p == 0)
        def _stats_pass():
            x = x_ref[...].astype(jnp.float32)

            @pl.when(first)
            def _():
                acc_s[...] = x
                acc_q[...] = x * x

            @pl.when(jnp.logical_not(first))
            def _():
                acc_s[...] = acc_s[...] + x
                acc_q[...] = acc_q[...] + x * x

            @pl.when(last)
            def _():
                mean = jnp.sum(acc_s[...], axis=reduce_axis, keepdims=True) * inv_count
                ex2 = jnp.sum(acc_q[...], axis=reduce_axis, keepdims=True) * inv_count
                var = jnp.maximum(ex2 - mean * mean, 0.0)        # biased (population) var
                scale = w_ref[...].astype(jnp.float32) * jax.lax.rsqrt(var + eps)
                sc_ref[...] = scale
                sh_ref[...] = b_ref[...].astype(jnp.float32) - mean * scale

        @pl.when(p == 1)
        def _normalize_pass():
            x = x_ref[...].astype(jnp.float32)
            o_ref[...] = (x * sc_ref[...] + sh_ref[...]).astype(o_ref.dtype)

    return kernel


def _pick_tile(dim, align, cap):
    """Largest divisor of `dim` that is a multiple of `align` and <= cap, else full dim."""
    if dim <= cap:
        return dim
    t = (cap // align) * align
    while t >= align:
        if dim % t == 0:
            return t
        t -= align
    # TODO(synk): large dims with no `align`-aligned divisor stay fully resident
    # (no masked ragged-tile path yet).
    return dim


def _row_stat_norm(x2, w_col, b_col, group_count, rows_per_group, cols,
                   tile_rows, tile_cols):
    """Kernel A: x2 is (group_count * rows_per_group, cols).

    Statistics are computed per stat-row s in [0, rows_per_group), aggregated over every
    group g and all columns (count = group_count * cols), then applied to every (g, s, :)
    row.  Used for 3-D BatchNorm (groups = batch, stat-rows = channels, cols = L — no
    transpose required) and for InstanceNorm (group_count = 1, per-row stats over L).
    """
    row_blocks = rows_per_group // tile_rows
    col_blocks = cols // tile_cols
    inv_count = 1.0 / float(group_count * cols)
    kernel = _make_norm_kernel(inv_count, EPS, reduce_axis=1)

    def x_map(r0, p, g, m):
        return (g * row_blocks + r0, m)

    def wb_map(r0, p, g, m):
        return (r0, 0)

    def out_map(r0, p, g, m):
        # Pass 0: park on this stat-block's first output tile (never written, never
        # flushed since pass 1 resumes on the same tile).  Pass 1: real tile index.
        return (p * g * row_blocks + r0, p * m)

    return pl.pallas_call(
        kernel,
        out_shape=jax.ShapeDtypeStruct(x2.shape, x2.dtype),
        grid_spec=pltpu.PrefetchScalarGridSpec(
            num_scalar_prefetch=0,
            grid=(row_blocks, 2, group_count, col_blocks),
            in_specs=[
                pl.BlockSpec((tile_rows, tile_cols), x_map),
                pl.BlockSpec((tile_rows, 1), wb_map),
                pl.BlockSpec((tile_rows, 1), wb_map),
            ],
            out_specs=pl.BlockSpec((tile_rows, tile_cols), out_map),
            scratch_shapes=[
                pltpu.VMEM((tile_rows, tile_cols), jnp.float32),  # running sum
                pltpu.VMEM((tile_rows, tile_cols), jnp.float32),  # running sum of squares
                pltpu.VMEM((tile_rows, 1), jnp.float32),          # per-row scale
                pltpu.VMEM((tile_rows, 1), jnp.float32),          # per-row shift
            ],
        ),
        compiler_params=pltpu.CompilerParams(
            dimension_semantics=("parallel", "arbitrary", "arbitrary", "arbitrary"),
            vmem_limit_bytes=_VMEM_LIMIT,
        ),
    )(x2, w_col, b_col)


def _col_stat_norm(x2, w_row, b_row, tile_rows, tile_cols):
    """Kernel B: x2 is (N, C) with channels already on the lane axis.

    Statistics are per lane-column, aggregated over all rows (count = N); the reduction
    runs over sublanes plus the row grid axis, so no transpose and no lane-axis XLU
    reduction in the hot loop.
    """
    n, c = x2.shape
    row_blocks = n // tile_rows
    col_blocks = c // tile_cols
    inv_count = 1.0 / float(n)
    kernel = _make_norm_kernel(inv_count, EPS, reduce_axis=0)

    def x_map(ct, p, r, d):
        return (r, ct)

    def wb_map(ct, p, r, d):
        return (0, ct)

    def out_map(ct, p, r, d):
        return (p * r, ct)

    return pl.pallas_call(
        kernel,
        out_shape=jax.ShapeDtypeStruct(x2.shape, x2.dtype),
        grid_spec=pltpu.PrefetchScalarGridSpec(
            num_scalar_prefetch=0,
            grid=(col_blocks, 2, row_blocks, 1),
            in_specs=[
                pl.BlockSpec((tile_rows, tile_cols), x_map),
                pl.BlockSpec((1, tile_cols), wb_map),
                pl.BlockSpec((1, tile_cols), wb_map),
            ],
            out_specs=pl.BlockSpec((tile_rows, tile_cols), out_map),
            scratch_shapes=[
                pltpu.VMEM((tile_rows, tile_cols), jnp.float32),
                pltpu.VMEM((tile_rows, tile_cols), jnp.float32),
                pltpu.VMEM((1, tile_cols), jnp.float32),
                pltpu.VMEM((1, tile_cols), jnp.float32),
            ],
        ),
        compiler_params=pltpu.CompilerParams(
            dimension_semantics=("parallel", "arbitrary", "arbitrary", "arbitrary"),
            vmem_limit_bytes=_VMEM_LIMIT,
        ),
    )(x2, w_row, b_row)


def batchnorm1d_forward(x, weight, bias):
    """Forward pass of the wrapped module.

    x:      (N, C, L) or (N, C)
    weight: (C,)  bias: (C,)   (BatchNorm1d affine params; InstanceNorm path ignores them)
    """
    if x.ndim <= 1:
        # TODO(synk): PyTorch InstanceNorm1d rejects true 1-D inputs; surface that cleanly
        # instead of silently diverging.
        raise ValueError("BatchNorm1d wrapper: 1-D inputs are not supported "
                         "(PyTorch InstanceNorm1d requires 2-D or 3-D input).")

    C = weight.shape[0]

    if x.shape[0] <= 1:
        # InstanceNorm1d path (affine=False): normalize each row over the last axis.
        # TODO(synk): a (1, C) 2-D input is normalized over its last axis here; PyTorch
        # InstanceNorm1d treats 2-D input as unbatched (C, L), so that edge case diverges.
        if x.ndim == 3:
            n, cx, length = x.shape
            x2 = x.reshape(n * cx, length)          # contiguous view, no copy
        else:
            x2 = x
        rows, cols = x2.shape
        tile_rows = _pick_tile(rows, 8, 128)
        tile_cols = _pick_tile(cols, 128, 1024)
        ones = jnp.ones((rows, 1), x.dtype)
        zeros = jnp.zeros((rows, 1), x.dtype)
        y2 = _row_stat_norm(x2, ones, zeros, 1, rows, cols, tile_rows, tile_cols)
        return y2.reshape(x.shape)

    # BatchNorm1d path: training-mode (biased) batch statistics + affine.
    # TODO(synk): running_mean / running_var buffers are not tracked (forward only).
    w_col = weight.reshape(C, 1)
    b_col = bias.reshape(C, 1)

    if x.ndim == 3:
        n, cx, length = x.shape
        if C % 8 == 0:
            # Hot path: no transpose.  (N, C, L) viewed as (N*C, L); channel == sublane
            # position of each (tile_C, tile_L) block; stats aggregate over the batch grid
            # axis and the lane tiles.
            x2 = x.reshape(n * C, length)
            tile_rows = _pick_tile(C, 8, 128)
            tile_cols = _pick_tile(length, 128, 1024)
            y2 = _row_stat_norm(x2, w_col, b_col, n, C, length, tile_rows, tile_cols)
            return y2.reshape(n, C, length)
        # Fallback for channel counts that do not tile on sublanes: one transpose so each
        # channel is a whole (full-first-dim) row block.
        x2 = jnp.transpose(x, (1, 0, 2)).reshape(C, n * length)
        tile_cols = _pick_tile(n * length, 128, 1024)
        y2 = _row_stat_norm(x2, w_col, b_col, 1, C, n * length, C, tile_cols)
        return jnp.transpose(y2.reshape(C, n, length), (1, 0, 2))

    # 2-D (N, C): channels already lane-dense; reduce over sublanes + the row grid axis.
    n = x.shape[0]
    tile_n = _pick_tile(n, 8, 256)
    tile_c = _pick_tile(C, 128, 1024)
    return _col_stat_norm(x, weight.reshape(1, C), bias.reshape(1, C), tile_n, tile_c)


def _reference(x, weight, bias):
    """Pure-JAX reference matching PyTorch semantics."""
    if x.ndim <= 1 or x.shape[0] <= 1:
        mean = jnp.mean(x, axis=-1, keepdims=True)
        var = jnp.mean((x - mean) ** 2, axis=-1, keepdims=True)
        return (x - mean) / jnp.sqrt(var + EPS)
    if x.ndim == 3:
        axes, shp = (0, 2), (1, -1, 1)
    else:
        axes, shp = (0,), (1, -1)
    mean = jnp.mean(x, axis=axes, keepdims=True)
    var = jnp.mean((x - mean) ** 2, axis=axes, keepdims=True)
    return (x - mean) / jnp.sqrt(var + EPS) * weight.reshape(shp) + bias.reshape(shp)


if __name__ == "__main__":
    key = jax.random.PRNGKey(0)
    kx, kx1, kx2, kx3, kw, kb = jax.random.split(key, 6)

    C = 8
    weight = 1.0 + 0.1 * jax.random.normal(kw, (C,), jnp.float32)
    bias = 0.1 * jax.random.normal(kb, (C,), jnp.float32)

    fwd = jax.jit(batchnorm1d_forward)

    # BatchNorm1d, 3-D (N, C, L) — transpose-free hot path.
    x_bn3 = jax.random.normal(kx, (4, C, 32), jnp.float32) * 2.0 + 0.5
    # InstanceNorm1d path (batch of 1).
    x_in = jax.random.normal(kx1, (1, C, 32), jnp.float32)
    # BatchNorm1d, 2-D (N, C) — lane-dense channel path.
    x_bn2 = jax.random.normal(kx2, (16, C), jnp.float32) * 1.5 - 0.3
    # Larger 3-D case exercising the multi-tile (pass, batch, lane-tile) reduction grid.
    C2 = 16
    w2 = 1.0 + 0.05 * jax.random.normal(kw, (C2,), jnp.float32)
    b2 = 0.05 * jax.random.normal(kb, (C2,), jnp.float32)
    x_big = jax.random.normal(kx3, (2, C2, 2048), jnp.float32) + 0.2

    y_bn3 = fwd(x_bn3, weight, bias)
    y_in = fwd(x_in, weight, bias)
    y_bn2 = fwd(x_bn2, weight, bias)
    y_big = fwd(x_big, w2, b2)
    jax.block_until_ready((y_bn3, y_in, y_bn2, y_big))

    assert y_bn3.shape == x_bn3.shape and y_in.shape == x_in.shape
    assert y_bn2.shape == x_bn2.shape and y_big.shape == x_big.shape
    assert jnp.allclose(y_bn3, _reference(x_bn3, weight, bias), atol=1e-4, rtol=1e-4)
    assert jnp.allclose(y_in, _reference(x_in, weight, bias), atol=1e-4, rtol=1e-4)
    assert jnp.allclose(y_bn2, _reference(x_bn2, weight, bias), atol=1e-4, rtol=1e-4)
    assert jnp.allclose(y_big, _reference(x_big, w2, b2), atol=1e-4, rtol=1e-4)

    print("KERNEL_OK")
</pallas_src>

<mosaic_0001>
module attributes {stable_mosaic.version = 11 : i64} {
  func.func @kernel(%arg0: i32, %arg1: i32, %arg2: i32, %arg3: i32, %arg4: memref<8x32xf32, #tpu.memory_space<vmem>>, %arg5: memref<8x1xf32, #tpu.memory_space<vmem>>, %arg6: memref<8x1xf32, #tpu.memory_space<vmem>>, %arg7: memref<8x32xf32, #tpu.memory_space<vmem>>, %arg8: memref<8x32xf32, #tpu.memory_space<vmem>>, %arg9: memref<8x32xf32, #tpu.memory_space<vmem>>, %arg10: memref<8x1xf32, #tpu.memory_space<vmem>>, %arg11: memref<8x1xf32, #tpu.memory_space<vmem>>) attributes {dimension_semantics = [#tpu.dimension_semantics<parallel>, #tpu.dimension_semantics<arbitrary>, #tpu.dimension_semantics<arbitrary>, #tpu.dimension_semantics<arbitrary>], iteration_bounds = array<i64: 1, 2, 4, 1>, scalar_prefetch = 0 : i64, scratch_operands = 4 : i64, tpu.core_type = #tpu.core_type<tc>, window_params = [{transform_indices = @transform_0, window_bounds = array<i64: 8, 32>}, {transform_indices = @transform_1, window_bounds = array<i64: 8, 1>}, {transform_indices = @transform_2, window_bounds = array<i64: 8, 1>}, {transform_indices = @transform_3, window_bounds = array<i64: 8, 32>}]} {
    %c0_i32 = arith.constant 0 : i32
    %0 = arith.cmpi eq, %arg2, %c0_i32 : i32
    %c0_i32_0 = arith.constant 0 : i32
    %1 = arith.cmpi eq, %arg3, %c0_i32_0 : i32
    %2 = arith.andi %0, %1 : i1
    %c3_i32 = arith.constant 3 : i32
    %3 = arith.cmpi eq, %arg2, %c3_i32 : i32
    %c0_i32_1 = arith.constant 0 : i32
    %4 = arith.cmpi eq, %arg3, %c0_i32_1 : i32
    %5 = arith.andi %3, %4 : i1
    %c0_i32_2 = arith.constant 0 : i32
    %6 = arith.cmpi eq, %arg1, %c0_i32_2 : i32
    %7 = arith.extui %6 : i1 to i32
    %c0_i32_3 = arith.constant 0 : i32
    %8 = arith.cmpi ne, %7, %c0_i32_3 : i32
    scf.if %8 {
      %c0 = arith.constant 0 : index
      %c0_5 = arith.constant 0 : index
      %12 = vector.load %arg4[%c0, %c0_5] : memref<8x32xf32, #tpu.memory_space<vmem>>, vector<8x32xf32>
      %13 = arith.extui %2 : i1 to i32
      %c0_i32_6 = arith.constant 0 : i32
      %14 = arith.cmpi ne, %13, %c0_i32_6 : i32
      scf.if %14 {
        %c0_9 = arith.constant 0 : index
        %c0_10 = arith.constant 0 : index
        %20 = vector.load %arg8[%c0_9, %c0_10] : memref<8x32xf32, #tpu.memory_space<vmem>>, vector<8x32xf32>
        tpu.vector_store %arg8[%c0_9, %c0_10], %12 {strides = array<i32>} : memref<8x32xf32, #tpu.memory_space<vmem>>, vector<8x32xf32>,
        %21 = arith.mulf %12, %12 : vector<8x32xf32>
        %c0_11 = arith.constant 0 : index
        %c0_12 = arith.constant 0 : index
        %22 = vector.load %arg9[%c0_11, %c0_12] : memref<8x32xf32, #tpu.memory_space<vmem>>, vector<8x32xf32>
        tpu.vector_store %arg9[%c0_11, %c0_12], %21 {strides = array<i32>} : memref<8x32xf32, #tpu.memory_space<vmem>>, vector<8x32xf32>,
      } else {
      }
      %true = arith.constant true
      %15 = arith.xori %2, %true : i1
      %16 = arith.extui %15 : i1 to i32
      %c0_i32_7 = arith.constant 0 : i32
      %17 = arith.cmpi ne, %16, %c0_i32_7 : i32
      scf.if %17 {
        %c0_9 = arith.constant 0 : index
        %c0_10 = arith.constant 0 : index
        %20 = vector.load %arg8[%c0_9, %c0_10] : memref<8x32xf32, #tpu.memory_space<vmem>>, vector<8x32xf32>
        %21 = arith.addf %20, %12 : vector<8x32xf32>
        %c0_11 = arith.constant 0 : index
        %c0_12 = arith.constant 0 : index
        %22 = vector.load %arg8[%c0_11, %c0_12] : memref<8x32xf32, #tpu.memory_space<vmem>>, vector<8x32xf32>
        tpu.vector_store %arg8[%c0_11, %c0_12], %21 {strides = array<i32>} : memref<8x32xf32, #tpu.memory_space<vmem>>, vector<8x32xf32>,
        %c0_13 = arith.constant 0 : index
        %c0_14 = arith.constant 0 : index
        %23 = vector.load %arg9[%c0_13, %c0_14] : memref<8x32xf32, #tpu.memory_space<vmem>>, vector<8x32xf32>
        %24 = arith.mulf %12, %12 : vector<8x32xf32>
        %25 = arith.addf %23, %24 : vector<8x32xf32>
        %c0_15 = arith.constant 0 : index
        %c0_16 = arith.constant 0 : index
        %26 = vector.load %arg9[%c0_15, %c0_16] : memref<8x32xf32, #tpu.memory_space<vmem>>, vector<8x32xf32>
        tpu.vector_store %arg9[%c0_15, %c0_16], %25 {strides = array<i32>} : memref<8x32xf32, #tpu.memory_space<vmem>>, vector<8x32xf32>,
      } else {
      }
      %18 = arith.extui %5 : i1 to i32
      %c0_i32_8 = arith.constant 0 : i32
      %19 = arith.cmpi ne, %18, %c0_i32_8 : i32
      scf.if %19 {
        %c0_9 = arith.constant 0 : index
        %c0_10 = arith.constant 0 : index
        %20 = vector.load %arg8[%c0_9, %c0_10] : memref<8x32xf32, #tpu.memory_space<vmem>>, vector<8x32xf32>
        %cst = arith.constant dense<0.000000e+00> : vector<8xf32>
        %21 = vector.multi_reduction <add>, %20, %cst [1] : vector<8x32xf32> to vector<8xf32>
        %22 = vector.shape_cast %21 : vector<8xf32> to vector<8x1xf32>
        %cst_11 = arith.constant 7.812500e-03 : f32
        %23 = vector.broadcast %cst_11 : f32 to vector<8x1xf32>
        %24 = arith.mulf %22, %23 : vector<8x1xf32>
        %c0_12 = arith.constant 0 : index
        %c0_13 = arith.constant 0 : index
        %25 = vector.load %arg9[%c0_12, %c0_13] : memref<8x32xf32, #tpu.memory_space<vmem>>, vector<8x32xf32>
        %cst_14 = arith.constant dense<0.000000e+00> : vector<8xf32>
        %26 = vector.multi_reduction <add>, %25, %cst_14 [1] : vector<8x32xf32> to vector<8xf32>
        %27 = vector.shape_cast %26 : vector<8xf32> to vector<8x1xf32>
        %cst_15 = arith.constant 7.812500e-03 : f32
        %28 = vector.broadcast %cst_15 : f32 to vector<8x1xf32>
        %29 = arith.mulf %27, %28 : vector<8x1xf32>
        %30 = arith.mulf %24, %24 : vector<8x1xf32>
        %31 = arith.subf %29, %30 : vector<8x1xf32>
        %cst_16 = arith.constant 0.000000e+00 : f32
        %32 = vector.broadcast %cst_16 : f32 to vector<8x1xf32>
        %33 = arith.maximumf %31, %32 : vector<8x1xf32>
        %c0_17 = arith.constant 0 : index
        %c0_18 = arith.constant 0 : index
        %34 = vector.load %arg5[%c0_17, %c0_18] : memref<8x1xf32, #tpu.memory_space<vmem>>, vector<8x1xf32>
        %cst_19 = arith.constant 9.99999974E-6 : f32
        %35 = vector.broadcast %cst_19 : f32 to vector<8x1xf32>
        %36 = arith.addf %33, %35 : vector<8x1xf32>
        %37 = math.rsqrt %36 : vector<8x1xf32>
        %38 = arith.mulf %34, %37 : vector<8x1xf32>
        %c0_20 = arith.constant 0 : index
        %c0_21 = arith.constant 0 : index
        %39 = vector.load %arg10[%c0_20, %c0_21] : memref<8x1xf32, #tpu.memory_space<vmem>>, vector<8x1xf32>
        tpu.vector_store %arg10[%c0_20, %c0_21], %38 {strides = array<i32>} : memref<8x1xf32, #tpu.memory_space<vmem>>, vector<8x1xf32>,
        %c0_22 = arith.constant 0 : index
        %c0_23 = arith.constant 0 : index
        %40 = vector.load %arg6[%c0_22, %c0_23] : memref<8x1xf32, #tpu.memory_space<vmem>>, vector<8x1xf32>
        %41 = arith.mulf %24, %38 : vector<8x1xf32>
        %42 = arith.subf %40, %41 : vector<8x1xf32>
        %c0_24 = arith.constant 0 : index
        %c0_25 = arith.constant 0 : index
        %43 = vector.load %arg11[%c0_24, %c0_25] : memref<8x1xf32, #tpu.memory_space<vmem>>, vector<8x1xf32>
        tpu.vector_store %arg11[%c0_24, %c0_25], %42 {strides = array<i32>} : memref<8x1xf32, #tpu.memory_space<vmem>>, vector<8x1xf32>,
      } else {
      }
    } else {
    }
    %c1_i32 = arith.constant 1 : i32
    %9 = arith.cmpi eq, %arg1, %c1_i32 : i32
    %10 = arith.extui %9 : i1 to i32
    %c0_i32_4 = arith.constant 0 : i32
    %11 = arith.cmpi ne, %10, %c0_i32_4 : i32
    scf.if %11 {
      %c0 = arith.constant 0 : index
      %c0_5 = arith.constant 0 : index
      %12 = vector.load %arg4[%c0, %c0_5] : memref<8x32xf32, #tpu.memory_space<vmem>>, vector<8x32xf32>
      %c0_6 = arith.constant 0 : index
      %c0_7 = arith.constant 0 : index
      %13 = vector.load %arg10[%c0_6, %c0_7] : memref<8x1xf32, #tpu.memory_space<vmem>>, vector<8x1xf32>
      %14 = vector.broadcast %13 : vector<8x1xf32> to vector<8x32xf32>
      %15 = arith.mulf %12, %14 : vector<8x32xf32>
      %c0_8 = arith.constant 0 : index
      %c0_9 = arith.constant 0 : index
      %16 = vector.load %arg11[%c0_8, %c0_9] : memref<8x1xf32, #tpu.memory_space<vmem>>, vector<8x1xf32>
      %17 = vector.broadcast %16 : vector<8x1xf32> to vector<8x32xf32>
      %18 = arith.addf %15, %17 : vector<8x32xf32>
      %c0_10 = arith.constant 0 : index
      %c0_11 = arith.constant 0 : index
      %19 = vector.load %arg7[%c0_10, %c0_11] : memref<8x32xf32, #tpu.memory_space<vmem>>, vector<8x32xf32>
      tpu.vector_store %arg7[%c0_10, %c0_11], %18 {strides = array<i32>} : memref<8x32xf32, #tpu.memory_space<vmem>>, vector<8x32xf32>,
    } else {
    }
    return
  }
  func.func @transform_0(%arg0: i32, %arg1: i32, %arg2: i32, %arg3: i32) -> (i32, i32) {
    %c1_i32 = arith.constant 1 : i32
    %0 = arith.muli %arg2, %c1_i32 : i32
    %1 = arith.addi %0, %arg0 : i32
    %c0_i32 = arith.constant 0 : i32
    return %1, %arg3 : i32, i32
  }
  func.func @transform_1(%arg0: i32, %arg1: i32, %arg2: i32, %arg3: i32) -> (i32, i32) {
    %c0_i32 = arith.constant 0 : i32
    %c0_i32_0 = arith.constant 0 : i32
    return %arg0, %c0_i32 : i32, i32
  }
  func.func @transform_2(%arg0: i32, %arg1: i32, %arg2: i32, %arg3: i32) -> (i32, i32) {
    %c0_i32 = arith.constant 0 : i32
    %c0_i32_0 = arith.constant 0 : i32
    return %arg0, %c0_i32 : i32, i32
  }
  func.func @transform_3(%arg0: i32, %arg1: i32, %arg2: i32, %arg3: i32) -> (i32, i32) {
    %0 = arith.muli %arg1, %arg2 : i32
    %c1_i32 = arith.constant 1 : i32
    %1 = arith.muli %0, %c1_i32 : i32
    %2 = arith.addi %1, %arg0 : i32
    %3 = arith.muli %arg1, %arg3 : i32
    %c0_i32 = arith.constant 0 : i32
    return %2, %3 : i32, i32
  }
}

</mosaic_0001>

<llo_original>
// kernel: batchnorm1d_forward.1
$region0: #{batchnorm1d_forward.1}
  #allocation0 [shape = 'u32[]', space=smem, size = 0x4, offset = 0x4, fixed_abs, tag = 'smem constant byte address 0x4 - core index']
  #allocation1 [shape = 'u32[144,128]{1,0:T(1,128)}', space=vmem, size = 0x12000, scoped, tag = 'internal scratch']
  #allocation2 [shape = 'f32[8,32]{1,0:T(8,128)}', space=vmem, size = 0x1000, scoped, tag = 'scratch operand']
  #allocation3 [shape = 'f32[8,32]{1,0:T(8,128)}', space=vmem, size = 0x1000, scoped, tag = 'scratch operand']
  #allocation4 [shape = 'f32[8,1]{1,0:T(8,128)}', space=vmem, size = 0x1000, scoped, tag = 'scratch operand']
  #allocation5 [shape = 'f32[8,1]{1,0:T(8,128)}', space=vmem, size = 0x1000, scoped, tag = 'scratch operand']
  %s0 = inlined_call_operand.hbm [shape: f32[32,32], index: 0, kind: input, shape index: {}]
  %s1 = inlined_call_operand.vmem [shape: f32[8,1], index: 1, kind: input, shape index: {}]
  %s2 = inlined_call_operand.vmem [shape: f32[8,1], index: 2, kind: input, shape index: {}]
  %s3 = inlined_call_operand.hbm [shape: f32[32,32], index: 3, kind: output, shape index: {}]
  %s4 = sld [smem:[#allocation0]]
  $region69: #{batchnorm1d_forward.1} parent=0
    _
  %s6 = ssub.s32 1, %s4
  %s7 = scalar_select 0, %s6, %s4
  $region1: #{batchnorm1d_forward.1} parent=0
    #allocation6 [shape = 'u8[8192]{0}', space=vmem, size = 0x2000, scoped, tag = 'input window, operand 0']
    #allocation7 [shape = 's32[2]{0}', space=sflag, size = 0x8, scoped, tag = 'scoped memory for batchnorm1d_forward.1']
    #allocation8 [shape = 's32[2]{0}', space=sflag, size = 0x8, scoped, tag = 'scoped memory for batchnorm1d_forward.1']
    #allocation9 [shape = 'u8[8192]{0}', space=vmem, size = 0x2000, scoped, tag = 'output window, operand 0']
    %8 = vsyncpa [#allocation7], 0
    %s9 = scalar_lea.sflag [#allocation7], 1
    %10 = vsyncpa %s9, 0
    %11 = vsyncpa [#allocation8], 0
    %s12 = scalar_lea.sflag [#allocation8], 1
    %13 = vsyncpa %s12, 0
    loop: start=0, step=1, limit=10
    $region2: #{batchnorm1d_forward.1} parent=1 // loop_pre_header
      _
    $region3: #{batchnorm1d_forward.1} parent=1 // loop_header
      %s15 = sphi 0, %s19
      %p16 = scmp.ge.s32.totalorder %s15, 10
      %s22 = sphi 0, %s48
      %s23 = sphi 0, %s44
      %s24 = sphi 0, %s40
      %s25 = sphi 0, %s36
      %s26 = sphi 0, %s22
      %s27 = sphi 0, %s23
      %s28 = sphi 0, %s24
      %s29 = sphi 0, %s25
      %s30 = sphi 0, %s26
      %s31 = sphi 0, %s27
      %s32 = sphi 0, %s28
      %s33 = sphi 0, %s29
      %s55 = sphi 0, %s57
      %s58 = sphi 0, %s55
      %s59 = sphi 0, %s58
      %s75 = sphi 0, %s59
      %s81 = sphi 0, %s83
      %s84 = sphi 0, %s81
      %s85 = sphi 0, %s84
      %s101 = sphi 0, %s85
      %s107 = sphi 0, %s109
      %s110 = sphi 0, %s107
      %s111 = sphi 0, %s110
      %s127 = sphi 0, %s111
      %s141 = sphi 0, %s143
      %s144 = sphi 0, %s141
      %s145 = sphi 0, %s144
      %s161 = sphi 0, %s145
    $region4: #{batchnorm1d_forward.1} parent=1 // loop_header_branch
      %18 = sbr.rel (%p16) target = $region8
    $region5: #{batchnorm1d_forward.1} parent=1 // loop_body
      %s20 = ssub.s32 %s15, 1
      %s21 = ssub.s32 %s15, 2
      %s34 = sadd.s32 1, %s25
      %p35 = scmp.ge.s32.totalorder %s34, 1
      %s36 = scalar_select %p35, 0, %s34
      %s37 = sadd.s32 1, %s24
      %s38 = scalar_select %p35, %s37, %s24
      %p39 = scmp.ge.s32.totalorder %s38, 4
      %s40 = scalar_select %p39, 0, %s38
      %s41 = sadd.s32 1, %s23
      %s42 = scalar_select %p39, %s41, %s23
      %p43 = scmp.ge.s32.totalorder %s42, 2
      %s44 = scalar_select %p43, 0, %s42
      %s45 = sadd.s32 1, %s22
      %s46 = scalar_select %p43, %s45, %s22
      %p47 = scmp.ge.s32.totalorder %s46, 1
      %s48 = scalar_select %p47, 0, %s46
      %s49 = sadd.s32 %s24, %s22
      %s50 = sadd.s32 %s40, %s48
      %s51 = ssub.s32 %s49, %s50
      %s52 = ssub.s32 %s25, %s36
      %s53 = sor.u32 %s51, %s52
      %p54 = scmp.eq.s32.totalorder %s53, 0
      %s56 = sadd.s32 %s55, 1
      %s57 = scalar_select %p54, %s55, %s56
      %p60 = pneg %p54
      %p61 = scmp.eq.s32.totalorder %s15, 7
      %p62 = por %p60, %p61
      %p63 = scmp.ne.s32.totalorder %s55, %s58
      %p64 = scmp.eq.s32.totalorder %s15, 0
      %p65 = por %p63, %p64
      %p66 = scmp.ne.s32.totalorder %s55, %s58
      %p67 = scmp.eq.s32.totalorder %s20, 7
      %p68 = por %p66, %p67
      %p69 = scmp.ne.s32.totalorder %s58, %s59
      %p70 = scmp.eq.s32.totalorder %s20, 0
      %p71 = por %p69, %p70
      %p72 = scmp.ne.s32.totalorder %s58, %s59
      %p73 = scmp.eq.s32.totalorder %s21, 7
      %p74 = por %p72, %p73
      %p76 = scmp.ne.s32.totalorder %s59, %s75
      %p77 = scmp.eq.s32.totalorder %s21, 0
      %p78 = por %p76, %p77
      %s79 = ssub.s32 %s22, %s48
      %p80 = scmp.eq.s32.totalorder %s79, 0
      %s82 = sadd.s32 %s81, 1
      %s83 = scalar_select %p80, %s81, %s82
      %p86 = pneg %p80
      %p87 = scmp.eq.s32.totalorder %s15, 7
      %p88 = por %p86, %p87
      %p89 = scmp.ne.s32.totalorder %s81, %s84
      %p90 = scmp.eq.s32.totalorder %s15, 0
      %p91 = por %p89, %p90
      %p92 = scmp.ne.s32.totalorder %s81, %s84
      %p93 = scmp.eq.s32.totalorder %s20, 7
      %p94 = por %p92, %p93
      %p95 = scmp.ne.s32.totalorder %s84, %s85
      %p96 = scmp.eq.s32.totalorder %s20, 0
      %p97 = por %p95, %p96
      %p98 = scmp.ne.s32.totalorder %s84, %s85
      %p99 = scmp.eq.s32.totalorder %s21, 7
      %p100 = por %p98, %p99
      %p102 = scmp.ne.s32.totalorder %s85, %s101
      %p103 = scmp.eq.s32.totalorder %s21, 0
      %p104 = por %p102, %p103
      %s105 = ssub.s32 %s22, %s48
      %p106 = scmp.eq.s32.totalorder %s105, 0
      %s108 = sadd.s32 %s107, 1
      %s109 = scalar_select %p106, %s107, %s108
      %p112 = pneg %p106
      %p113 = scmp.eq.s32.totalorder %s15, 7
      %p114 = por %p112, %p113
      %p115 = scmp.ne.s32.totalorder %s107, %s110
      %p116 = scmp.eq.s32.totalorder %s15, 0
      %p117 = por %p115, %p116
      %p118 = scmp.ne.s32.totalorder %s107, %s110
      %p119 = scmp.eq.s32.totalorder %s20, 7
      %p120 = por %p118, %p119
      %p121 = scmp.ne.s32.totalorder %s110, %s111
      %p122 = scmp.eq.s32.totalorder %s20, 0
      %p123 = por %p121, %p122
      %p124 = scmp.ne.s32.totalorder %s110, %s111
      %p125 = scmp.eq.s32.totalorder %s21, 7
      %p126 = por %p124, %p125
      %p128 = scmp.ne.s32.totalorder %s111, %s127
      %p129 = scmp.eq.s32.totalorder %s21, 0
      %p130 = por %p128, %p129
      %s131 = smul.u32 %s23, %s24
      %s132 = sadd.s32 %s131, %s22
      %s133 = smul.u32 %s23, %s25
      %s134 = smul.u32 %s44, %s40
      %s135 = sadd.s32 %s134, %s48
      %s136 = smul.u32 %s44, %s36
      %s137 = ssub.s32 %s132, %s135
      %s138 = ssub.s32 %s133, %s136
      %s139 = sor.u32 %s137, %s138
      %p140 = scmp.eq.s32.totalorder %s139, 0
      %s142 = sadd.s32 %s141, 1
      %s143 = scalar_select %p140, %s141, %s142
      %p146 = pneg %p140
      %p147 = scmp.eq.s32.totalorder %s15, 7
      %p148 = por %p146, %p147
      %p149 = scmp.ne.s32.totalorder %s141, %s144
      %p150 = scmp.eq.s32.totalorder %s15, 0
      %p151 = por %p149, %p150
      %p152 = scmp.ne.s32.totalorder %s141, %s144
      %p153 = scmp.eq.s32.totalorder %s20, 7
      %p154 = por %p152, %p153
      %p155 = scmp.ne.s32.totalorder %s144, %s145
      %p156 = scmp.eq.s32.totalorder %s20, 0
      %p157 = por %p155, %p156
      %p158 = scmp.ne.s32.totalorder %s144, %s145
      %p159 = scmp.eq.s32.totalorder %s21, 7
      %p160 = por %p158, %p159
      %p162 = scmp.ne.s32.totalorder %s145, %s161
      %p163 = scmp.eq.s32.totalorder %s21, 0
      %p164 = por %p162, %p163
      %p165 = scmp.le.s32.totalorder 1, %s15
      %p166 = scmp.lt.s32.totalorder %s15, 9
      %p167 = pnand %p165, %p166
      %p168 = pneg %p167
      // Predicated region
      $region9: #{batchnorm1d_forward.1} parent=5 // pred_check
        _
      $region10: #{batchnorm1d_forward.1} parent=5 // pred_check_branch
        %170 = sbr.rel (%p167) target = $region12
      $region11: #{batchnorm1d_forward.1} parent=5 // pred_region
        %s171 = ssub.s32 %s15, 1
        // Predicated region
        $region13: #{batchnorm1d_forward.1} parent=11 // pred_check
          %p172 = pneg %p97
        $region14: #{batchnorm1d_forward.1} parent=11 // pred_check_branch
          %174 = sbr.rel (%p172) target = $region16
        $region15: #{batchnorm1d_forward.1} parent=11 // pred_region
          %p175 = scmp.lt.s32.totalorder %s26, 0
          %s176 = scalar_select %p175, %s26, 0
          %s177 = smul.addr %s176, 8
          %s178 = scalar_lea.vmem %s1, %s177
        $region16: #{batchnorm1d_forward.1} parent=11 // pred_fallthru
          _
        // Predicated region
        $region17: #{batchnorm1d_forward.1} parent=11 // pred_check
          %p179 = pneg %p123
        $region18: #{batchnorm1d_forward.1} parent=11 // pred_check_branch
          %181 = sbr.rel (%p179) target = $region20
        $region19: #{batchnorm1d_forward.1} parent=11 // pred_region
          %p182 = scmp.lt.s32.totalorder %s26, 0
          %s183 = scalar_select %p182, %s26, 0
          %s184 = smul.addr %s183, 8
          %s185 = scalar_lea.vmem %s2, %s184
        $region20: #{batchnorm1d_forward.1} parent=11 // pred_fallthru
          _
      $region12: #{batchnorm1d_forward.1} parent=5 // pred_fallthru
        _
      %p186 = scmp.lt.s32.totalorder %s15, 8
      // Predicated region
      $region21: #{batchnorm1d_forward.1} parent=5 // pred_check
        %p187 = pneg %p186
      $region22: #{batchnorm1d_forward.1} parent=5 // pred_check_branch
        %189 = sbr.rel (%p187) target = $region24
      $region23: #{batchnorm1d_forward.1} parent=5 // pred_region
        // Predicated region
        $region25: #{batchnorm1d_forward.1} parent=23 // pred_check
          %p190 = pneg %p65
        $region26: #{batchnorm1d_forward.1} parent=23 // pred_check_branch
          %192 = sbr.rel (%p190) target = $region28
        $region27: #{batchnorm1d_forward.1} parent=23 // pred_region
          %s193 = sand.u32 %s55, 1
          %s194 = scalar_lea.sflag [#allocation7], %s193
          %s195 = sand.u32 %s55, 1
          %s196 = smul.addr %s195, 8
          %s197 = scalar_lea.vmem [#allocation6], %s196
          %s198 = sadd.s32 %s24, %s22
          %s200 = ssub.s32 128, 128
          %201 = vsyncadd %s194, %s200
          %s202 = sadd.s32 %s25, %s198
          %s203 = smul.addr %s202, 128
          %s204 = scalar_lea.hbm %s0, %s203
          %s206 = sshll.u32 %s197, 4
          %s207 = int_to_ptr.vmem [resolvable:$true] %s206
          %209 = dma.hbm_to_vmem [thread:$0]  %s204, 128, %s207, %s194
        $region28: #{batchnorm1d_forward.1} parent=23 // pred_fallthru
          _
      $region24: #{batchnorm1d_forward.1} parent=5 // pred_fallthru
        _
      %p210 = scmp.le.s32.totalorder 1, %s15
      %p211 = scmp.lt.s32.totalorder %s15, 9
      %p212 = pnand %p210, %p211
      %p213 = pneg %p212
      // Predicated region
      $region29: #{batchnorm1d_forward.1} parent=5 // pred_check
        _
      $region30: #{batchnorm1d_forward.1} parent=5 // pred_check_branch
        %215 = sbr.rel (%p212) target = $region32
      $region31: #{batchnorm1d_forward.1} parent=5 // pred_region
        %s216 = ssub.s32 %s15, 1
        %s217 = sand.u32 %s58, 1
        %s218 = scalar_lea.sflag [#allocation7], %s217
        %s219 = sand.u32 %s58, 1
        %s220 = smul.addr %s219, 8
        %s221 = scalar_lea.vmem [#allocation6], %s220
        // Predicated region
        $region33: #{batchnorm1d_forward.1} parent=31 // pred_check
          %p222 = pneg %p71
        $region34: #{batchnorm1d_forward.1} parent=31 // pred_check_branch
          %224 = sbr.rel (%p222) target = $region36
        $region35: #{batchnorm1d_forward.1} parent=31 // pred_region
          %225 = dma.done %s218, 128
        $region36: #{batchnorm1d_forward.1} parent=31 // pred_fallthru
          _
        %s226 = sand.u32 %s58, 1
        %s227 = scalar_lea.sflag [#allocation7], %s226
        %s228 = sand.u32 %s58, 1
        %s229 = smul.addr %s228, 8
        %s230 = scalar_lea.vmem [#allocation6], %s229
        %p231 = pneg %p71
        %p232 = pneg %p68
        %p233 = scmp.lt.s32.totalorder %s26, 0
        %s234 = scalar_select %p233, %s26, 0
        %s235 = smul.addr %s234, 8
        %s236 = scalar_lea.vmem %s1, %s235
        %p237 = pneg %p97
        %p238 = pneg %p94
        %p239 = scmp.lt.s32.totalorder %s26, 0
        %s240 = scalar_select %p239, %s26, 0
        %s241 = smul.addr %s240, 8
        %s242 = scalar_lea.vmem %s2, %s241
        %p243 = pneg %p123
        %p244 = pneg %p120
        %p245 = pneg %p157
        %p246 = pneg %p154
        %s247 = sand.u32 %s144, 1
        %s248 = scalar_lea.sflag [#allocation8], %s247
        %s249 = sand.u32 %s144, 1
        %s250 = smul.addr %s249, 8
        %s251 = scalar_lea.vmem [#allocation9], %s250
        %s252 = sadd.s32 %s28, %s26
        %p253 = scmp.lt.s32.totalorder %s26, 0
        %s254 = scalar_select %p253, %s26, 0
        %s255 = smul.addr %s254, 8
        %s256 = scalar_lea.vmem %s1, %s255
        %p257 = scmp.lt.s32.totalorder %s26, 0
        %s258 = scalar_select %p257, %s26, 0
        %s259 = smul.addr %s258, 8
        %s260 = scalar_lea.vmem %s2, %s259
        %s261 = smul.u32 %s27, %s28
        %s262 = sadd.s32 %s261, %s26
        %s263 = smul.u32 %s27, %s29
        %p264 = scmp.eq.s32.totalorder %s28, 0
        %p265 = scmp.eq.s32.totalorder %s29, 0
        %p266 = pnand %p264, %p265
        %p267 = pneg %p266
        %p268 = scmp.eq.s32.totalorder %s28, 3
        %p269 = pnand %p268, %p265
        %p270 = pneg %p269
        %p271 = scmp.eq.s32.totalorder %s27, 0
        // Predicated region
        $region37: #{batchnorm1d_forward.1} parent=31 // pred_check
          %p272 = pneg %p271
        $region38: #{batchnorm1d_forward.1} parent=31 // pred_check_branch
          %274 = sbr.rel (%p272) target = $region40
        $region39: #{batchnorm1d_forward.1} parent=31 // pred_region
          %v275 = vld [vmem:[%s221] sm:$0xff]
          // Predicated region
          $region41: #{batchnorm1d_forward.1} parent=39 // pred_check
            _
          $region42: #{batchnorm1d_forward.1} parent=39 // pred_check_branch
            %277 = sbr.rel (%p266) target = $region44
          $region43: #{batchnorm1d_forward.1} parent=39 // pred_region
            %vm278 = vcmask 261120
            %279 = vst.msk [vmem:[#allocation2] sm:$0xff] %vm278, %v275
            %v280 = vmul.f32 %v275, %v275
            %281 = vst.msk [vmem:[#allocation3] sm:$0xff] %vm278, %v280
          $region44: #{batchnorm1d_forward.1} parent=39 // pred_fallthru
            _
          %p282 = pneg %p267
          // Predicated region
          $region45: #{batchnorm1d_forward.1} parent=39 // pred_check
            _
          $region46: #{batchnorm1d_forward.1} parent=39 // pred_check_branch
            %284 = sbr.rel (%p267) target = $region48
          $region47: #{batchnorm1d_forward.1} parent=39 // pred_region
            %v285 = vld [vmem:[#allocation2] sm:$0xff]
            %v286 = vadd.f32 %v285, %v275
            %vm287 = vcmask 261120
            %288 = vst.msk [vmem:[#allocation2] sm:$0xff] %vm287, %v286
            %v289 = vld [vmem:[#allocation3] sm:$0xff]
            %v290 = vmul.f32 %v275, %v275
            %v291 = vadd.f32 %v289, %v290
            %292 = vst.msk [vmem:[#allocation3] sm:$0xff] %vm287, %v291
          $region48: #{batchnorm1d_forward.1} parent=39 // pred_fallthru
            _
          // Predicated region
          $region49: #{batchnorm1d_forward.1} parent=39 // pred_check
            _
          $region50: #{batchnorm1d_forward.1} parent=39 // pred_check_branch
            %294 = sbr.rel (%p269) target = $region52
          $region51: #{batchnorm1d_forward.1} parent=39 // pred_region
            %v295 = vld [vmem:[#allocation2] sm:$0xff]
            %vm296 = vcmask 261120
            %v297 = vsel %vm296, %v295, 0.0
            %298 = vadd.xlane.f32.xlu0 %v297
            %v299 = vpop.xlane.xlu0 %298
            %v300 = vmul.f32 %v299, 0.0078125
            %v301 = vld [vmem:[#allocation3] sm:$0xff]
            %v302 = vsel %vm296, %v301, 0.0
            %303 = vadd.xlane.f32.xlu0 %v302
            %v304 = vpop.xlane.xlu0 %303
            %v305 = vmul.f32 %v304, 0.0078125
            %v306 = vmul.f32 %v300, %v300
            %v307 = vsub.f32 %v305, %v306
            %v308 = vmax.f32 %v307, 0.0
            %v309 = vld [vmem:[%s256] sm:$0xff]
            %v310 = vadd.f32 %v308, 1e-05
            %v311 = vrsqrt.pop %v310
            %v312 = vmul.f32 %v309, %v311
            %vm313 = vcmask 7168
            %314 = vst.msk [vmem:[#allocation4] sm:$0xff] %vm313, %v312
            %v315 = vld [vmem:[%s260] sm:$0xff]
            %v316 = vmul.f32 %v300, %v312
            %v317 = vsub.f32 %v315, %v316
            %318 = vst.msk [vmem:[#allocation5] sm:$0xff] %vm313, %v317
          $region52: #{batchnorm1d_forward.1} parent=39 // pred_fallthru
            _
        $region40: #{batchnorm1d_forward.1} parent=31 // pred_fallthru
          _
        %p319 = scmp.eq.s32.totalorder %s27, 1
        // Predicated region
        $region53: #{batchnorm1d_forward.1} parent=31 // pred_check
          %p320 = pneg %p319
        $region54: #{batchnorm1d_forward.1} parent=31 // pred_check_branch
          %322 = sbr.rel (%p320) target = $region56
        $region55: #{batchnorm1d_forward.1} parent=31 // pred_region
          %v323 = vld [vmem:[%s221] sm:$0xff]
          %v324 = vld [vmem:[#allocation4] sm:$0xff]
          %326 = vset.pattern.permute.xlu0 0
          %327 = vperm.xlu0 %326, %v324
          %v328 = vpop.permute.xlu0 %327
          %v330 = vmul.f32 %v323, %v328
          %v331 = vld [vmem:[#allocation5] sm:$0xff]
          %333 = vset.pattern.permute.xlu0 0
          %334 = vperm.xlu0 %333, %v331
          %v335 = vpop.permute.xlu0 %334
          %v337 = vadd.f32 %v330, %v335
          %vm338 = vcmask 261120
          %339 = vst.msk [vmem:[%s251] sm:$0xff] %vm338, %v337
        $region56: #{batchnorm1d_forward.1} parent=31 // pred_fallthru
          _
        %s340 = sand.u32 %s144, 1
        %s341 = scalar_lea.sflag [#allocation8], %s340
        %s342 = sand.u32 %s144, 1
        %s343 = smul.addr %s342, 8
        %s344 = scalar_lea.vmem [#allocation9], %s343
        // Predicated region
        $region57: #{batchnorm1d_forward.1} parent=31 // pred_check
          %p345 = pneg %p154
        $region58: #{batchnorm1d_forward.1} parent=31 // pred_check_branch
          %347 = sbr.rel (%p345) target = $region60
        $region59: #{batchnorm1d_forward.1} parent=31 // pred_region
          %s348 = smul.u32 %s27, %s28
          %s349 = sadd.s32 %s348, %s26
          %s350 = smul.u32 %s27, %s29
          %s352 = ssub.s32 128, 128
          %353 = vsyncadd %s341, %s352
          %s354 = sadd.s32 %s350, %s349
          %s355 = smul.addr %s354, 128
          %s356 = scalar_lea.hbm %s3, %s355
          %s358 = sshll.u32 %s344, 4
          %s359 = int_to_ptr.vmem [resolvable:$true] %s358
          %361 = dma.vmem_to_hbm [thread:$0]  %s359, 128, %s356, %s341
        $region60: #{batchnorm1d_forward.1} parent=31 // pred_fallthru
          _
      $region32: #{batchnorm1d_forward.1} parent=5 // pred_fallthru
        _
      %p362 = scmp.le.s32.totalorder 2, %s15
      // Predicated region
      $region61: #{batchnorm1d_forward.1} parent=5 // pred_check
        %p363 = pneg %p362
      $region62: #{batchnorm1d_forward.1} parent=5 // pred_check_branch
        %365 = sbr.rel (%p363) target = $region64
      $region63: #{batchnorm1d_forward.1} parent=5 // pred_region
        %s366 = ssub.s32 %s15, 2
        // Predicated region
        $region65: #{batchnorm1d_forward.1} parent=63 // pred_check
          %p367 = pneg %p160
        $region66: #{batchnorm1d_forward.1} parent=63 // pred_check_branch
          %369 = sbr.rel (%p367) target = $region68
        $region67: #{batchnorm1d_forward.1} parent=63 // pred_region
          %s370 = sand.u32 %s145, 1
          %s371 = scalar_lea.sflag [#allocation8], %s370
          %s372 = sand.u32 %s145, 1
          %s373 = smul.addr %s372, 8
          %s374 = scalar_lea.vmem [#allocation9], %s373
          %375 = dma.done %s371, 128
        $region68: #{batchnorm1d_forward.1} parent=63 // pred_fallthru
          _
      $region64: #{batchnorm1d_forward.1} parent=5 // pred_fallthru
        _
    $region6: #{batchnorm1d_forward.1} parent=1 // loop_footer
      %s19 = sadd.s32 1, %s15
    $region7: #{batchnorm1d_forward.1} parent=1 // loop_footer_branch
      %14 = sbr.rel target = $region3
    $region8: #{batchnorm1d_forward.1} parent=1 // loop_exit
      _
    %376 = vsyncpa [#allocation7], 1
    %s377 = scalar_lea.sflag [#allocation7], 1
    %378 = vsyncpa %s377, 1
    %379 = vsyncpa [#allocation8], 1
    %s380 = scalar_lea.sflag [#allocation8], 1
    %381 = vsyncpa %s380, 1

</llo_original>
